<compile_context>
chip_gen: v6e
topology: v6e:2x2x1
jax: 0.10.0
libtpu: 0.0.40
codegen_flags: <defaults>
</compile_context>

<pallas_src>
import functools

import jax
import jax.numpy as jnp
from jax import lax
from jax.experimental import pallas as pl
from jax.experimental.pallas import tpu as pltpu

_DMA_WINDOW = 32          # outstanding row-gather DMAs in the HBM path
_LANE = 128
_SUBLANE = 8


def _round_up(x, m):
    return ((x + m - 1) // m) * m


# --------------------------------------------------------------------------
# Fast path: embedding table resident in VMEM, gather via dynamic vector loads.
# --------------------------------------------------------------------------
def _vmem_gather_kernel(ids_ref, w_ref, o_ref, *, tile_tokens, vocab_start,
                        vocab_end):
    # ids_ref : SMEM (n_pad,) int32   raw token ids (scalar prefetch)
    # w_ref   : VMEM (V, E)           resident embedding table
    # o_ref   : VMEM (tile_tokens, E) output block
    base = pl.program_id(0) * tile_tokens

    def body(t, carry):
        tok = ids_ref[base + t]
        in_r = jnp.logical_and(tok >= vocab_start, tok < vocab_end)
        row = jnp.where(in_r, tok - vocab_start, 0)
        vec = w_ref[pl.ds(row, 1), :]                       # dynamic VMEM load
        o_ref[pl.ds(t, 1), :] = vec * in_r.astype(vec.dtype)
        return carry

    lax.fori_loop(0, tile_tokens, body, 0, unroll=8)


# --------------------------------------------------------------------------
# Large-table path: table stays in HBM, per-row DMAs with a bounded window.
# --------------------------------------------------------------------------
def _hbm_gather_kernel(ids_ref, w_hbm, o_ref, buf, sems, *, tile_tokens,
                       vocab_start, vocab_end, window):
    # ids_ref : SMEM (n_pad,) int32    raw token ids (scalar prefetch)
    # w_hbm   : HBM  (V, E)            raw ref, gathered by row-DMA
    # o_ref   : VMEM (tile_tokens, E)  output block
    # buf     : VMEM (tile_tokens, E)  gather scratch
    # sems    : DMA semaphore ring (window,)
    base = pl.program_id(0) * tile_tokens
    zero_row = jnp.zeros((1, buf.shape[1]), buf.dtype)

    def _descriptor(t):
        tok = ids_ref[base + t]
        in_r = jnp.logical_and(tok >= vocab_start, tok < vocab_end)
        row = jnp.where(in_r, tok - vocab_start, 0)
        cp = pltpu.make_async_copy(
            w_hbm.at[pl.ds(row, 1), :],
            buf.at[pl.ds(t, 1), :],
            sems.at[t % window],
        )
        return in_r, cp

    def body(t, carry):
        # Scalar address math for the current row first (keeps scalar slots
        # busy; the descriptor is ready the moment the old slot's wait clears).
        in_r, cp = _descriptor(t)

        # Retire the DMA issued `window` iterations ago before reusing its
        # semaphore slot (a DMA was only issued if that token was in range).
        @pl.when(t >= window)
        def _():
            in_r_old, cp_old = _descriptor(t - window)

            @pl.when(in_r_old)
            def _():
                cp_old.wait()

        @pl.when(in_r)
        def _():
            cp.start()

        @pl.when(jnp.logical_not(in_r))
        def _():
            # Out-of-vocab token: no HBM traffic, just zero the row.
            buf[pl.ds(t, 1), :] = zero_row

        return carry

    lax.fori_loop(0, tile_tokens, body, 0, unroll=4)

    # Drain the last `window` outstanding gathers.
    def drain(t, carry):
        in_r, cp = _descriptor(t)

        @pl.when(in_r)
        def _():
            cp.wait()

        return carry

    lax.fori_loop(max(0, tile_tokens - window), tile_tokens, drain, 0,
                  unroll=True)

    o_ref[...] = buf[...]


# --------------------------------------------------------------------------
# Wrapper
# --------------------------------------------------------------------------
def vocab_parallel_embedding_3d(input_ids, weight, vocab_start_index,
                                vocab_end_index, tile_tokens=None,
                                force_hbm_gather=False):
    """Masked embedding lookup: out[t] = weight[ids[t]-start], 0 if out of range."""
    orig_shape = input_ids.shape
    vocab, embed_dim = weight.shape
    start = int(vocab_start_index)
    end = int(vocab_end_index)
    itemsize = jnp.dtype(weight.dtype).itemsize

    flat = input_ids.reshape(-1).astype(jnp.int32)
    n_tokens = flat.shape[0]

    # Per-generation VMEM budget (v5e/v6e: 128 MiB, v7x: 64 MiB per TC).
    try:
        vmem_cap = int(pltpu.get_tpu_info().vmem_capacity_bytes)
    except Exception:
        vmem_cap = 64 * 1024 * 1024            # conservative (v7x per-TC)
    vmem_limit = min(int(vmem_cap) * 3 // 4, 100 * 1024 * 1024)

    # VMEM-resident-table fast path when the (lane-padded, conservatively
    # double-counted) table leaves room for a reasonable output tile.
    e_pad = _round_up(embed_dim, _LANE)
    table_vmem = 2 * vocab * e_pad * itemsize
    use_vmem_table = (not force_hbm_gather) and (
        table_vmem <= vmem_limit - (8 << 20))

    if use_vmem_table:
        e_used = e_pad
        w_used = weight if e_used == embed_dim else jnp.pad(
            weight, ((0, 0), (0, e_used - embed_dim)))
        per_token = 2 * e_used * itemsize          # double-buffered out block
        avail = vmem_limit - table_vmem - (4 << 20)
    else:
        e_used = embed_dim
        w_used = weight
        per_token = 3 * e_used * itemsize          # 2x out block + gather buf
        avail = vmem_limit - (4 << 20)

    if tile_tokens is None:
        cap = 1024 if vmem_limit >= (80 << 20) else 512
        t = max(_SUBLANE, avail // max(per_token, 1))
        t = min(int(t), cap)
        # Keep at least 2 grid steps so both TensorCores get work on v7x.
        if n_tokens >= 2 * _SUBLANE:
            t = min(t, _round_up(-(-n_tokens // 2), _SUBLANE))
        t = max(_SUBLANE, (t // _SUBLANE) * _SUBLANE)
        tile_tokens = min(t, _round_up(n_tokens, _SUBLANE))
    tile_tokens = max(_SUBLANE, _round_up(int(tile_tokens), _SUBLANE))

    n_pad = _round_up(n_tokens, tile_tokens)
    if n_pad != n_tokens:
        # Padding ids land outside [start, end) -> their rows come out as zero.
        flat = jnp.concatenate(
            [flat, jnp.full((n_pad - n_tokens,), end, jnp.int32)])
    # TODO(synk): for very large token counts (>~256K) chunk `flat` across
    # multiple pallas_calls so the scalar-prefetched id vector stays in SMEM.

    grid = (n_pad // tile_tokens,)

    if use_vmem_table:
        kernel = functools.partial(_vmem_gather_kernel, tile_tokens=tile_tokens,
                                   vocab_start=start, vocab_end=end)
        in_specs = [pl.BlockSpec((vocab, e_used), lambda i, ids: (0, 0))]
        scratch_shapes = []
    else:
        kernel = functools.partial(_hbm_gather_kernel, tile_tokens=tile_tokens,
                                   vocab_start=start, vocab_end=end,
                                   window=_DMA_WINDOW)
        in_specs = [pl.BlockSpec(memory_space=pl.ANY)]
        scratch_shapes = [pltpu.VMEM((tile_tokens, e_used), w_used.dtype),
                          pltpu.SemaphoreType.DMA((_DMA_WINDOW,))]

    out = pl.pallas_call(
        kernel,
        out_shape=jax.ShapeDtypeStruct((n_pad, e_used), w_used.dtype),
        grid_spec=pltpu.PrefetchScalarGridSpec(
            num_scalar_prefetch=1,               # raw token ids -> SMEM
            grid=grid,
            in_specs=in_specs,
            out_specs=pl.BlockSpec((tile_tokens, e_used),
                                   lambda i, ids: (i, 0)),
            scratch_shapes=scratch_shapes,
        ),
        compiler_params=pltpu.CompilerParams(
            dimension_semantics=("parallel",),   # row tiles split across TCs
            vmem_limit_bytes=int(vmem_limit),
        ),
    )(flat, w_used)

    if n_pad != n_tokens:
        out = out[:n_tokens]
    if e_used != embed_dim:
        out = out[:, :embed_dim]
    return out.reshape(*orig_shape, embed_dim)


class VocabParallelEmbedding3DPallas:
    """Minimal JAX equivalent of cubework VocabParallelEmbedding3D (depth = 1)."""

    def __init__(self, num_embeddings, embedding_dim, padding_idx=None,
                 dtype=jnp.float32, key=None):
        self.depth = 1                       # single-device synthetic setting
        self.num_embeddings = num_embeddings
        self.embed_dim = embedding_dim
        self.padding_idx = padding_idx
        self.num_embeddings_per_partition = num_embeddings // self.depth ** 2
        self.embed_dim_per_partition = embedding_dim // self.depth
        # local_rank = 0 at depth 1
        self.vocab_start_index = 0
        self.vocab_end_index = (self.vocab_start_index
                                + self.num_embeddings_per_partition * self.depth)
        if key is None:
            key = jax.random.PRNGKey(0)
        w = jax.random.normal(
            key, (self.num_embeddings_per_partition, self.embed_dim_per_partition),
            dtype=dtype)
        if (padding_idx is not None
                and self.vocab_start_index <= padding_idx < self.vocab_end_index):
            w = w.at[padding_idx - self.vocab_start_index].set(0.0)
        self.weight = w
        # TODO(synk): split_tensor / all_gather_weight_3d / reduce_scatter_tensor_3d
        # are cross-device collectives; at depth = 1 they are identities.

    def __call__(self, input_ids):
        return vocab_parallel_embedding_3d(
            input_ids, self.weight, self.vocab_start_index, self.vocab_end_index)


def _reference(ids, weight, start, end):
    mask = (ids < start) | (ids >= end)
    local = jnp.where(mask, 0, ids - start)
    out = jnp.take(weight, local.reshape(-1), axis=0)
    out = out.reshape(*ids.shape, weight.shape[1])
    return jnp.where(mask[..., None], 0.0, out)


if __name__ == "__main__":
    key = jax.random.PRNGKey(0)
    k_w, k_ids, k_ids2 = jax.random.split(key, 3)

    vocab, embed_dim = 128, 128
    batch, seq = 2, 8
    padding_idx = 3

    module = VocabParallelEmbedding3DPallas(vocab, embed_dim,
                                            padding_idx=padding_idx, key=k_w)
    ids = jax.random.randint(k_ids, (batch, seq), 0, vocab, dtype=jnp.int32)

    # 1) Module forward (depth = 1 -> full-range partition), VMEM fast path.
    out = jax.block_until_ready(module(ids))
    ref = _reference(ids, module.weight, module.vocab_start_index,
                     module.vocab_end_index)
    assert out.shape == (batch, seq, embed_dim) and out.dtype == module.weight.dtype
    assert jnp.allclose(out, ref, atol=1e-6, rtol=1e-6)

    # 2) Simulated non-zero-rank partition [32, 96): exercises OOV masking.
    out2 = jax.block_until_ready(
        vocab_parallel_embedding_3d(ids, module.weight, 32, 96))
    assert jnp.allclose(out2, _reference(ids, module.weight, 32, 96),
                        atol=1e-6, rtol=1e-6)

    # 3) Forced HBM-gather path: sliding-window row DMAs with OOV skip.
    #    tile_tokens=64 > window=32, so the in-loop semaphore-ring waits run.
    ids_big = jax.random.randint(k_ids2, (4, 32), 0, vocab, dtype=jnp.int32)
    out3 = jax.block_until_ready(
        vocab_parallel_embedding_3d(ids_big, module.weight, 32, 96,
                                    tile_tokens=64, force_hbm_gather=True))
    assert jnp.allclose(out3, _reference(ids_big, module.weight, 32, 96),
                        atol=1e-6, rtol=1e-6)

    # 4) Same shape through the default (VMEM-resident) path, multi-step grid.
    out4 = jax.block_until_ready(
        vocab_parallel_embedding_3d(ids_big, module.weight, 32, 96))
    assert jnp.allclose(out4, out3, atol=1e-6, rtol=1e-6)

    print("KERNEL_OK")
</pallas_src>

<mosaic_0001>
module attributes {stable_mosaic.version = 11 : i64} {
  func.func @_vmem_gather_kernel(%arg0: i32, %arg1: memref<16xi32, #tpu.memory_space<smem>>, %arg2: memref<128x128xf32, #tpu.memory_space<vmem>>, %arg3: memref<8x128xf32, #tpu.memory_space<vmem>>) attributes {dimension_semantics = [#tpu.dimension_semantics<parallel>], iteration_bounds = array<i64: 2>, scalar_prefetch = 1 : i64, scratch_operands = 0 : i64, tpu.core_type = #tpu.core_type<tc>, window_params = [{pipeline_mode = #tpu.pipeline_mode<synchronous>, transform_indices = @transform_0, window_bounds = array<i64: 128, 128>}, {transform_indices = @transform_1, window_bounds = array<i64: 8, 128>}]} {
    %c8_i32 = arith.constant 8 : i32
    %0 = arith.muli %arg0, %c8_i32 : i32
    %c0_i32 = arith.constant 0 : i32
    %1 = arith.addi %0, %c0_i32 : i32
    %2 = arith.index_cast %1 : i32 to index
    %3 = memref.load %arg1[%2] : memref<16xi32, #tpu.memory_space<smem>>
    %c0_i32_0 = arith.constant 0 : i32
    %4 = arith.cmpi sge, %3, %c0_i32_0 : i32
    %c128_i32 = arith.constant 128 : i32
    %5 = arith.cmpi slt, %3, %c128_i32 : i32
    %6 = arith.andi %4, %5 : i1
    %c0_i32_1 = arith.constant 0 : i32
    %7 = arith.subi %3, %c0_i32_1 : i32
    %c0_i32_2 = arith.constant 0 : i32
    %8 = arith.select %6, %7, %c0_i32_2 : i32
    %9 = arith.index_cast %8 : i32 to index
    %c0 = arith.constant 0 : index
    %10 = vector.load %arg2[%9, %c0] : memref<128x128xf32, #tpu.memory_space<vmem>>, vector<1x128xf32>
    %11 = arith.extui %6 : i1 to i32
    %12 = arith.sitofp %11 : i32 to f32
    %13 = vector.broadcast %12 : f32 to vector<1x128xf32>
    %14 = arith.mulf %10, %13 : vector<1x128xf32>
    %15 = arith.index_cast %c0_i32 : i32 to index
    %c0_3 = arith.constant 0 : index
    %16 = vector.load %arg3[%15, %c0_3] : memref<8x128xf32, #tpu.memory_space<vmem>>, vector<1x128xf32>
    tpu.vector_store %arg3[%15, %c0_3], %14 {strides = array<i32>} : memref<8x128xf32, #tpu.memory_space<vmem>>, vector<1x128xf32>,
    %c1_i32 = arith.constant 1 : i32
    %17 = arith.addi %0, %c1_i32 : i32
    %18 = arith.index_cast %17 : i32 to index
    %19 = memref.load %arg1[%18] : memref<16xi32, #tpu.memory_space<smem>>
    %c0_i32_4 = arith.constant 0 : i32
    %20 = arith.cmpi sge, %19, %c0_i32_4 : i32
    %c128_i32_5 = arith.constant 128 : i32
    %21 = arith.cmpi slt, %19, %c128_i32_5 : i32
    %22 = arith.andi %20, %21 : i1
    %c0_i32_6 = arith.constant 0 : i32
    %23 = arith.subi %19, %c0_i32_6 : i32
    %c0_i32_7 = arith.constant 0 : i32
    %24 = arith.select %22, %23, %c0_i32_7 : i32
    %25 = arith.index_cast %24 : i32 to index
    %c0_8 = arith.constant 0 : index
    %26 = vector.load %arg2[%25, %c0_8] : memref<128x128xf32, #tpu.memory_space<vmem>>, vector<1x128xf32>
    %27 = arith.extui %22 : i1 to i32
    %28 = arith.sitofp %27 : i32 to f32
    %29 = vector.broadcast %28 : f32 to vector<1x128xf32>
    %30 = arith.mulf %26, %29 : vector<1x128xf32>
    %31 = arith.index_cast %c1_i32 : i32 to index
    %c0_9 = arith.constant 0 : index
    %32 = vector.load %arg3[%31, %c0_9] : memref<8x128xf32, #tpu.memory_space<vmem>>, vector<1x128xf32>
    tpu.vector_store %arg3[%31, %c0_9], %30 {strides = array<i32>} : memref<8x128xf32, #tpu.memory_space<vmem>>, vector<1x128xf32>,
    %c2_i32 = arith.constant 2 : i32
    %33 = arith.addi %0, %c2_i32 : i32
    %34 = arith.index_cast %33 : i32 to index
    %35 = memref.load %arg1[%34] : memref<16xi32, #tpu.memory_space<smem>>
    %c0_i32_10 = arith.constant 0 : i32
    %36 = arith.cmpi sge, %35, %c0_i32_10 : i32
    %c128_i32_11 = arith.constant 128 : i32
    %37 = arith.cmpi slt, %35, %c128_i32_11 : i32
    %38 = arith.andi %36, %37 : i1
    %c0_i32_12 = arith.constant 0 : i32
    %39 = arith.subi %35, %c0_i32_12 : i32
    %c0_i32_13 = arith.constant 0 : i32
    %40 = arith.select %38, %39, %c0_i32_13 : i32
    %41 = arith.index_cast %40 : i32 to index
    %c0_14 = arith.constant 0 : index
    %42 = vector.load %arg2[%41, %c0_14] : memref<128x128xf32, #tpu.memory_space<vmem>>, vector<1x128xf32>
    %43 = arith.extui %38 : i1 to i32
    %44 = arith.sitofp %43 : i32 to f32
    %45 = vector.broadcast %44 : f32 to vector<1x128xf32>
    %46 = arith.mulf %42, %45 : vector<1x128xf32>
    %47 = arith.index_cast %c2_i32 : i32 to index
    %c0_15 = arith.constant 0 : index
    %48 = vector.load %arg3[%47, %c0_15] : memref<8x128xf32, #tpu.memory_space<vmem>>, vector<1x128xf32>
    tpu.vector_store %arg3[%47, %c0_15], %46 {strides = array<i32>} : memref<8x128xf32, #tpu.memory_space<vmem>>, vector<1x128xf32>,
    %c3_i32 = arith.constant 3 : i32
    %49 = arith.addi %0, %c3_i32 : i32
    %50 = arith.index_cast %49 : i32 to index
    %51 = memref.load %arg1[%50] : memref<16xi32, #tpu.memory_space<smem>>
    %c0_i32_16 = arith.constant 0 : i32
    %52 = arith.cmpi sge, %51, %c0_i32_16 : i32
    %c128_i32_17 = arith.constant 128 : i32
    %53 = arith.cmpi slt, %51, %c128_i32_17 : i32
    %54 = arith.andi %52, %53 : i1
    %c0_i32_18 = arith.constant 0 : i32
    %55 = arith.subi %51, %c0_i32_18 : i32
    %c0_i32_19 = arith.constant 0 : i32
    %56 = arith.select %54, %55, %c0_i32_19 : i32
    %57 = arith.index_cast %56 : i32 to index
    %c0_20 = arith.constant 0 : index
    %58 = vector.load %arg2[%57, %c0_20] : memref<128x128xf32, #tpu.memory_space<vmem>>, vector<1x128xf32>
    %59 = arith.extui %54 : i1 to i32
    %60 = arith.sitofp %59 : i32 to f32
    %61 = vector.broadcast %60 : f32 to vector<1x128xf32>
    %62 = arith.mulf %58, %61 : vector<1x128xf32>
    %63 = arith.index_cast %c3_i32 : i32 to index
    %c0_21 = arith.constant 0 : index
    %64 = vector.load %arg3[%63, %c0_21] : memref<8x128xf32, #tpu.memory_space<vmem>>, vector<1x128xf32>
    tpu.vector_store %arg3[%63, %c0_21], %62 {strides = array<i32>} : memref<8x128xf32, #tpu.memory_space<vmem>>, vector<1x128xf32>,
    %c4_i32 = arith.constant 4 : i32
    %65 = arith.addi %0, %c4_i32 : i32
    %66 = arith.index_cast %65 : i32 to index
    %67 = memref.load %arg1[%66] : memref<16xi32, #tpu.memory_space<smem>>
    %c0_i32_22 = arith.constant 0 : i32
    %68 = arith.cmpi sge, %67, %c0_i32_22 : i32
    %c128_i32_23 = arith.constant 128 : i32
    %69 = arith.cmpi slt, %67, %c128_i32_23 : i32
    %70 = arith.andi %68, %69 : i1
    %c0_i32_24 = arith.constant 0 : i32
    %71 = arith.subi %67, %c0_i32_24 : i32
    %c0_i32_25 = arith.constant 0 : i32
    %72 = arith.select %70, %71, %c0_i32_25 : i32
    %73 = arith.index_cast %72 : i32 to index
    %c0_26 = arith.constant 0 : index
    %74 = vector.load %arg2[%73, %c0_26] : memref<128x128xf32, #tpu.memory_space<vmem>>, vector<1x128xf32>
    %75 = arith.extui %70 : i1 to i32
    %76 = arith.sitofp %75 : i32 to f32
    %77 = vector.broadcast %76 : f32 to vector<1x128xf32>
    %78 = arith.mulf %74, %77 : vector<1x128xf32>
    %79 = arith.index_cast %c4_i32 : i32 to index
    %c0_27 = arith.constant 0 : index
    %80 = vector.load %arg3[%79, %c0_27] : memref<8x128xf32, #tpu.memory_space<vmem>>, vector<1x128xf32>
    tpu.vector_store %arg3[%79, %c0_27], %78 {strides = array<i32>} : memref<8x128xf32, #tpu.memory_space<vmem>>, vector<1x128xf32>,
    %c5_i32 = arith.constant 5 : i32
    %81 = arith.addi %0, %c5_i32 : i32
    %82 = arith.index_cast %81 : i32 to index
    %83 = memref.load %arg1[%82] : memref<16xi32, #tpu.memory_space<smem>>
    %c0_i32_28 = arith.constant 0 : i32
    %84 = arith.cmpi sge, %83, %c0_i32_28 : i32
    %c128_i32_29 = arith.constant 128 : i32
    %85 = arith.cmpi slt, %83, %c128_i32_29 : i32
    %86 = arith.andi %84, %85 : i1
    %c0_i32_30 = arith.constant 0 : i32
    %87 = arith.subi %83, %c0_i32_30 : i32
    %c0_i32_31 = arith.constant 0 : i32
    %88 = arith.select %86, %87, %c0_i32_31 : i32
    %89 = arith.index_cast %88 : i32 to index
    %c0_32 = arith.constant 0 : index
    %90 = vector.load %arg2[%89, %c0_32] : memref<128x128xf32, #tpu.memory_space<vmem>>, vector<1x128xf32>
    %91 = arith.extui %86 : i1 to i32
    %92 = arith.sitofp %91 : i32 to f32
    %93 = vector.broadcast %92 : f32 to vector<1x128xf32>
    %94 = arith.mulf %90, %93 : vector<1x128xf32>
    %95 = arith.index_cast %c5_i32 : i32 to index
    %c0_33 = arith.constant 0 : index
    %96 = vector.load %arg3[%95, %c0_33] : memref<8x128xf32, #tpu.memory_space<vmem>>, vector<1x128xf32>
    tpu.vector_store %arg3[%95, %c0_33], %94 {strides = array<i32>} : memref<8x128xf32, #tpu.memory_space<vmem>>, vector<1x128xf32>,
    %c6_i32 = arith.constant 6 : i32
    %97 = arith.addi %0, %c6_i32 : i32
    %98 = arith.index_cast %97 : i32 to index
    %99 = memref.load %arg1[%98] : memref<16xi32, #tpu.memory_space<smem>>
    %c0_i32_34 = arith.constant 0 : i32
    %100 = arith.cmpi sge, %99, %c0_i32_34 : i32
    %c128_i32_35 = arith.constant 128 : i32
    %101 = arith.cmpi slt, %99, %c128_i32_35 : i32
    %102 = arith.andi %100, %101 : i1
    %c0_i32_36 = arith.constant 0 : i32
    %103 = arith.subi %99, %c0_i32_36 : i32
    %c0_i32_37 = arith.constant 0 : i32
    %104 = arith.select %102, %103, %c0_i32_37 : i32
    %105 = arith.index_cast %104 : i32 to index
    %c0_38 = arith.constant 0 : index
    %106 = vector.load %arg2[%105, %c0_38] : memref<128x128xf32, #tpu.memory_space<vmem>>, vector<1x128xf32>
    %107 = arith.extui %102 : i1 to i32
    %108 = arith.sitofp %107 : i32 to f32
    %109 = vector.broadcast %108 : f32 to vector<1x128xf32>
    %110 = arith.mulf %106, %109 : vector<1x128xf32>
    %111 = arith.index_cast %c6_i32 : i32 to index
    %c0_39 = arith.constant 0 : index
    %112 = vector.load %arg3[%111, %c0_39] : memref<8x128xf32, #tpu.memory_space<vmem>>, vector<1x128xf32>
    tpu.vector_store %arg3[%111, %c0_39], %110 {strides = array<i32>} : memref<8x128xf32, #tpu.memory_space<vmem>>, vector<1x128xf32>,
    %c7_i32 = arith.constant 7 : i32
    %113 = arith.addi %0, %c7_i32 : i32
    %114 = arith.index_cast %113 : i32 to index
    %115 = memref.load %arg1[%114] : memref<16xi32, #tpu.memory_space<smem>>
    %c0_i32_40 = arith.constant 0 : i32
    %116 = arith.cmpi sge, %115, %c0_i32_40 : i32
    %c128_i32_41 = arith.constant 128 : i32
    %117 = arith.cmpi slt, %115, %c128_i32_41 : i32
    %118 = arith.andi %116, %117 : i1
    %c0_i32_42 = arith.constant 0 : i32
    %119 = arith.subi %115, %c0_i32_42 : i32
    %c0_i32_43 = arith.constant 0 : i32
    %120 = arith.select %118, %119, %c0_i32_43 : i32
    %121 = arith.index_cast %120 : i32 to index
    %c0_44 = arith.constant 0 : index
    %122 = vector.load %arg2[%121, %c0_44] : memref<128x128xf32, #tpu.memory_space<vmem>>, vector<1x128xf32>
    %123 = arith.extui %118 : i1 to i32
    %124 = arith.sitofp %123 : i32 to f32
    %125 = vector.broadcast %124 : f32 to vector<1x128xf32>
    %126 = arith.mulf %122, %125 : vector<1x128xf32>
    %127 = arith.index_cast %c7_i32 : i32 to index
    %c0_45 = arith.constant 0 : index
    %128 = vector.load %arg3[%127, %c0_45] : memref<8x128xf32, #tpu.memory_space<vmem>>, vector<1x128xf32>
    tpu.vector_store %arg3[%127, %c0_45], %126 {strides = array<i32>} : memref<8x128xf32, #tpu.memory_space<vmem>>, vector<1x128xf32>,
    %c8_i32_46 = arith.constant 8 : i32
    return
  }
  func.func @transform_0(%arg0: i32, %arg1: memref<16xi32, #tpu.memory_space<smem>>) -> (i32, i32) {
    %c0_i32 = arith.constant 0 : i32
    %c0_i32_0 = arith.constant 0 : i32
    %c0_i32_1 = arith.constant 0 : i32
    return %c0_i32, %c0_i32_0 : i32, i32
  }
  func.func @transform_1(%arg0: i32, %arg1: memref<16xi32, #tpu.memory_space<smem>>) -> (i32, i32) {
    %c0_i32 = arith.constant 0 : i32
    %c0_i32_0 = arith.constant 0 : i32
    return %arg0, %c0_i32 : i32, i32
  }
}

</mosaic_0001>

<llo_original>
// kernel: tpu_custom_call.1
$region0: #{tpu_custom_call.1}
  #allocation0 [shape = 'u32[]', space=smem, size = 0x4, offset = 0x4, fixed_abs, tag = 'smem constant byte address 0x4 - core index']
  #allocation1 [shape = 'u32[144,128]{1,0:T(1,128)}', space=vmem, size = 0x12000, scoped, tag = 'internal scratch']
  #allocation2 [shape = 's32[1]{0}', space=sflag, size = 0x4, scoped, tag = 'scoped memory for tpu_custom_call.1']
  #allocation3 [shape = 'u8[512]{0}', space=smem, size = 0x200, scoped, tag = 'prefetched SMEM operand 0']
  %s0 = inlined_call_operand.hbm [shape: s32[16], index: 0, kind: input, shape index: {}]
  %s1 = inlined_call_operand.hbm [shape: f32[128,128], index: 1, kind: input, shape index: {}]
  %s2 = inlined_call_operand.hbm [shape: f32[16,128], index: 2, kind: output, shape index: {}]
  %s3 = sld [smem:[#allocation0]]
  $region41: #{tpu_custom_call.1} parent=0
    _
  %s5 = ssub.s32 1, %s3
  %s6 = scalar_select 0, %s5, %s3
  %8 = dma.hbm_to_smem %s0, 16, [#allocation3], [#allocation2]
  %9 = dma.done [#allocation2], 16
  %10 = sfence
  $region1: #{tpu_custom_call.1} parent=0
    #allocation4 [shape = 'u8[65536]{0}', space=vmem, size = 0x10000, scoped, tag = 'input window, operand 1, single buffered']
    #allocation5 [shape = 's32[2]{0}', space=sflag, size = 0x8, scoped, tag = 'scoped memory for tpu_custom_call.1']
    #allocation6 [shape = 's32[2]{0}', space=sflag, size = 0x8, scoped, tag = 'scoped memory for tpu_custom_call.1']
    #allocation7 [shape = 'u8[8192]{0}', space=vmem, size = 0x2000, scoped, tag = 'output window, operand 0']
    %11 = vsyncpa [#allocation5], 0
    %12 = vsyncpa [#allocation6], 0
    %s13 = scalar_lea.sflag [#allocation6], 1
    %14 = vsyncpa %s13, 0
    loop: start=0, step=1, limit=4
    $region2: #{tpu_custom_call.1} parent=1 // loop_pre_header
      _
    $region3: #{tpu_custom_call.1} parent=1 // loop_header
      %s16 = sphi 0, %s20
      %p17 = scmp.ge.s32.totalorder %s16, 4
      %s24 = sphi 0, %s24
      %s26 = sphi 0, %s24
      %s27 = sphi 0, %s26
      %s41 = sphi 0, %s27
      %s47 = sphi 0, %s49
      %s50 = sphi 0, %s47
      %s51 = sphi 0, %s50
      %s67 = sphi 0, %s51
    $region4: #{tpu_custom_call.1} parent=1 // loop_header_branch
      %19 = sbr.rel (%p17) target = $region8
    $region5: #{tpu_custom_call.1} parent=1 // loop_body
      %s21 = ssub.s32 %s16, 1
      %s22 = ssub.s32 %s16, 2
      %s23 = sadd.s32 %s16, 1
      %s25 = sadd.s32 %s24, 1
      %p28 = scmp.eq.s32.totalorder %s16, 1
      %p29 = scmp.ne.s32.totalorder %s24, %s26
      %p30 = scmp.eq.s32.totalorder %s16, 0
      %p31 = por %p29, %p30
      %p32 = scmp.ne.s32.totalorder %s24, %s26
      %p33 = scmp.eq.s32.totalorder %s21, 1
      %p34 = por %p32, %p33
      %p35 = scmp.ne.s32.totalorder %s26, %s27
      %p36 = scmp.eq.s32.totalorder %s21, 0
      %p37 = por %p35, %p36
      %p38 = scmp.ne.s32.totalorder %s26, %s27
      %p39 = scmp.eq.s32.totalorder %s22, 1
      %p40 = por %p38, %p39
      %p42 = scmp.ne.s32.totalorder %s27, %s41
      %p43 = scmp.eq.s32.totalorder %s22, 0
      %p44 = por %p42, %p43
      %s45 = ssub.s32 %s16, %s23
      %p46 = scmp.eq.s32.totalorder %s45, 0
      %s48 = sadd.s32 %s47, 1
      %s49 = scalar_select %p46, %s47, %s48
      %p52 = pneg %p46
      %p53 = scmp.eq.s32.totalorder %s16, 1
      %p54 = por %p52, %p53
      %p55 = scmp.ne.s32.totalorder %s47, %s50
      %p56 = scmp.eq.s32.totalorder %s16, 0
      %p57 = por %p55, %p56
      %p58 = scmp.ne.s32.totalorder %s47, %s50
      %p59 = scmp.eq.s32.totalorder %s21, 1
      %p60 = por %p58, %p59
      %p61 = scmp.ne.s32.totalorder %s50, %s51
      %p62 = scmp.eq.s32.totalorder %s21, 0
      %p63 = por %p61, %p62
      %p64 = scmp.ne.s32.totalorder %s50, %s51
      %p65 = scmp.eq.s32.totalorder %s22, 1
      %p66 = por %p64, %p65
      %p68 = scmp.ne.s32.totalorder %s51, %s67
      %p69 = scmp.eq.s32.totalorder %s22, 0
      %p70 = por %p68, %p69
      %p71 = scmp.le.s32.totalorder 1, %s16
      %p72 = scmp.lt.s32.totalorder %s16, 3
      %p73 = pnand %p71, %p72
      %p74 = pneg %p73
      // Predicated region
      $region9: #{tpu_custom_call.1} parent=5 // pred_check
        _
      $region10: #{tpu_custom_call.1} parent=5 // pred_check_branch
        %76 = sbr.rel (%p73) target = $region12
      $region11: #{tpu_custom_call.1} parent=5 // pred_region
        %s77 = ssub.s32 %s16, 1
        // Predicated region
        $region13: #{tpu_custom_call.1} parent=11 // pred_check
          %p78 = pneg %p37
        $region14: #{tpu_custom_call.1} parent=11 // pred_check_branch
          %80 = sbr.rel (%p78) target = $region16
        $region15: #{tpu_custom_call.1} parent=11 // pred_region
          %s82 = ssub.s32 2048, 2048
          %83 = vsyncadd [#allocation5], %s82
          %s84 = sshll.u32 [#allocation4], 4
          %s85 = int_to_ptr.vmem [resolvable:$true] %s84
          %90 = dma.hbm_to_vmem [thread:$0]  %s1, 2048, %s85, [#allocation5], 128, 128, 8
        $region16: #{tpu_custom_call.1} parent=11 // pred_fallthru
          _
      $region12: #{tpu_custom_call.1} parent=5 // pred_fallthru
        _
      %p91 = scmp.lt.s32.totalorder %s16, 2
      // Predicated region
      $region17: #{tpu_custom_call.1} parent=5 // pred_check
        %p92 = pneg %p91
      $region18: #{tpu_custom_call.1} parent=5 // pred_check_branch
        %94 = sbr.rel (%p92) target = $region20
      $region19: #{tpu_custom_call.1} parent=5 // pred_region
        _
      $region20: #{tpu_custom_call.1} parent=5 // pred_fallthru
        _
      %p95 = scmp.le.s32.totalorder 1, %s16
      %p96 = scmp.lt.s32.totalorder %s16, 3
      %p97 = pnand %p95, %p96
      %p98 = pneg %p97
      // Predicated region
      $region21: #{tpu_custom_call.1} parent=5 // pred_check
        _
      $region22: #{tpu_custom_call.1} parent=5 // pred_check_branch
        %100 = sbr.rel (%p97) target = $region24
      $region23: #{tpu_custom_call.1} parent=5 // pred_region
        %s101 = ssub.s32 %s16, 1
        // Predicated region
        $region25: #{tpu_custom_call.1} parent=23 // pred_check
          %p102 = pneg %p37
        $region26: #{tpu_custom_call.1} parent=23 // pred_check_branch
          %104 = sbr.rel (%p102) target = $region28
        $region27: #{tpu_custom_call.1} parent=23 // pred_region
          %105 = dma.done [#allocation5], 2048
        $region28: #{tpu_custom_call.1} parent=23 // pred_fallthru
          _
        %p106 = pneg %p37
        %p107 = pneg %p34
        %p108 = pneg %p63
        %p109 = pneg %p60
        %s110 = sand.u32 %s50, 1
        %s111 = scalar_lea.sflag [#allocation6], %s110
        %s112 = sand.u32 %s50, 1
        %s113 = smul.addr %s112, 8
        %s114 = scalar_lea.vmem [#allocation7], %s113
        %s115 = smul.u32 %s21, 8
        %s116 = sld [smem:[#allocation3 + %s115]]
        %p117 = scmp.ge.s32.totalorder %s116, 0
        %p118 = scmp.lt.s32.totalorder %s116, 128
        %p119 = pnand %p117, %p118
        %p120 = pneg %p119
        %s121 = scalar_select %p120, %s116, 0
        %s122 = scalar_lea.vmem [#allocation4], %s121
        %v123 = vld [vmem:[%s122] sm:$0x1]
        %s124 = scalar_select %p120, 1, 0
        %s125 = scvt.s32.f32 %s124
        %v126 = vstv %s125
        %v127 = vmul.f32 %v123, %v126
        %128 = vst [vmem:[%s114] sm:$0x1] %v127
        %s129 = sadd.s32 %s115, 1
        %s130 = sld [smem:[#allocation3 + %s129]]
        %p131 = scmp.ge.s32.totalorder %s130, 0
        %p132 = scmp.lt.s32.totalorder %s130, 128
        %p133 = pnand %p131, %p132
        %p134 = pneg %p133
        %s135 = scalar_select %p134, %s130, 0
        %s136 = scalar_lea.vmem [#allocation4], %s135
        %v137 = vld [vmem:[%s136] sm:$0x1]
        %s138 = scalar_select %p134, 1, 0
        %s139 = scvt.s32.f32 %s138
        %v140 = vstv %s139
        %v141 = vmul.f32 %v137, %v140
        %142 = vst [vmem:[%s114 + $0x1] sm:$0x1] %v141
        %s143 = sadd.s32 %s115, 2
        %s144 = sld [smem:[#allocation3 + %s143]]
        %p145 = scmp.ge.s32.totalorder %s144, 0
        %p146 = scmp.lt.s32.totalorder %s144, 128
        %p147 = pnand %p145, %p146
        %p148 = pneg %p147
        %s149 = scalar_select %p148, %s144, 0
        %s150 = scalar_lea.vmem [#allocation4], %s149
        %v151 = vld [vmem:[%s150] sm:$0x1]
        %s152 = scalar_select %p148, 1, 0
        %s153 = scvt.s32.f32 %s152
        %v154 = vstv %s153
        %v155 = vmul.f32 %v151, %v154
        %156 = vst [vmem:[%s114 + $0x2] sm:$0x1] %v155
        %s157 = sadd.s32 %s115, 3
        %s158 = sld [smem:[#allocation3 + %s157]]
        %p159 = scmp.ge.s32.totalorder %s158, 0
        %p160 = scmp.lt.s32.totalorder %s158, 128
        %p161 = pnand %p159, %p160
        %p162 = pneg %p161
        %s163 = scalar_select %p162, %s158, 0
        %s164 = scalar_lea.vmem [#allocation4], %s163
        %v165 = vld [vmem:[%s164] sm:$0x1]
        %s166 = scalar_select %p162, 1, 0
        %s167 = scvt.s32.f32 %s166
        %v168 = vstv %s167
        %v169 = vmul.f32 %v165, %v168
        %170 = vst [vmem:[%s114 + $0x3] sm:$0x1] %v169
        %s171 = sadd.s32 %s115, 4
        %s172 = sld [smem:[#allocation3 + %s171]]
        %p173 = scmp.ge.s32.totalorder %s172, 0
        %p174 = scmp.lt.s32.totalorder %s172, 128
        %p175 = pnand %p173, %p174
        %p176 = pneg %p175
        %s177 = scalar_select %p176, %s172, 0
        %s178 = scalar_lea.vmem [#allocation4], %s177
        %v179 = vld [vmem:[%s178] sm:$0x1]
        %s180 = scalar_select %p176, 1, 0
        %s181 = scvt.s32.f32 %s180
        %v182 = vstv %s181
        %v183 = vmul.f32 %v179, %v182
        %184 = vst [vmem:[%s114 + $0x4] sm:$0x1] %v183
        %s185 = sadd.s32 %s115, 5
        %s186 = sld [smem:[#allocation3 + %s185]]
        %p187 = scmp.ge.s32.totalorder %s186, 0
        %p188 = scmp.lt.s32.totalorder %s186, 128
        %p189 = pnand %p187, %p188
        %p190 = pneg %p189
        %s191 = scalar_select %p190, %s186, 0
        %s192 = scalar_lea.vmem [#allocation4], %s191
        %v193 = vld [vmem:[%s192] sm:$0x1]
        %s194 = scalar_select %p190, 1, 0
        %s195 = scvt.s32.f32 %s194
        %v196 = vstv %s195
        %v197 = vmul.f32 %v193, %v196
        %198 = vst [vmem:[%s114 + $0x5] sm:$0x1] %v197
        %s199 = sadd.s32 %s115, 6
        %s200 = sld [smem:[#allocation3 + %s199]]
        %p201 = scmp.ge.s32.totalorder %s200, 0
        %p202 = scmp.lt.s32.totalorder %s200, 128
        %p203 = pnand %p201, %p202
        %p204 = pneg %p203
        %s205 = scalar_select %p204, %s200, 0
        %s206 = scalar_lea.vmem [#allocation4], %s205
        %v207 = vld [vmem:[%s206] sm:$0x1]
        %s208 = scalar_select %p204, 1, 0
        %s209 = scvt.s32.f32 %s208
        %v210 = vstv %s209
        %v211 = vmul.f32 %v207, %v210
        %212 = vst [vmem:[%s114 + $0x6] sm:$0x1] %v211
        %s213 = sadd.s32 %s115, 7
        %s214 = sld [smem:[#allocation3 + %s213]]
        %p215 = scmp.ge.s32.totalorder %s214, 0
        %p216 = scmp.lt.s32.totalorder %s214, 128
        %p217 = pnand %p215, %p216
        %p218 = pneg %p217
        %s219 = scalar_select %p218, %s214, 0
        %s220 = scalar_lea.vmem [#allocation4], %s219
        %v221 = vld [vmem:[%s220] sm:$0x1]
        %s222 = scalar_select %p218, 1, 0
        %s223 = scvt.s32.f32 %s222
        %v224 = vstv %s223
        %v225 = vmul.f32 %v221, %v224
        %226 = vst [vmem:[%s114 + $0x7] sm:$0x1] %v225
        %s227 = sand.u32 %s50, 1
        %s228 = scalar_lea.sflag [#allocation6], %s227
        %s229 = sand.u32 %s50, 1
        %s230 = smul.addr %s229, 8
        %s231 = scalar_lea.vmem [#allocation7], %s230
        // Predicated region
        $region29: #{tpu_custom_call.1} parent=23 // pred_check
          %p232 = pneg %p60
        $region30: #{tpu_custom_call.1} parent=23 // pred_check_branch
          %234 = sbr.rel (%p232) target = $region32
        $region31: #{tpu_custom_call.1} parent=23 // pred_region
          %s236 = ssub.s32 128, 128
          %237 = vsyncadd %s228, %s236
          %s238 = smul.addr %s21, 128
          %s239 = scalar_lea.hbm %s2, %s238
          %s241 = sshll.u32 %s231, 4
          %s242 = int_to_ptr.vmem [resolvable:$true] %s241
          %244 = dma.vmem_to_hbm [thread:$0]  %s242, 128, %s239, %s228
        $region32: #{tpu_custom_call.1} parent=23 // pred_fallthru
          _
      $region24: #{tpu_custom_call.1} parent=5 // pred_fallthru
        _
      %p245 = scmp.le.s32.totalorder 2, %s16
      // Predicated region
      $region33: #{tpu_custom_call.1} parent=5 // pred_check
        %p246 = pneg %p245
      $region34: #{tpu_custom_call.1} parent=5 // pred_check_branch
        %248 = sbr.rel (%p246) target = $region36
      $region35: #{tpu_custom_call.1} parent=5 // pred_region
        %s249 = ssub.s32 %s16, 2
        // Predicated region
        $region37: #{tpu_custom_call.1} parent=35 // pred_check
          %p250 = pneg %p66
        $region38: #{tpu_custom_call.1} parent=35 // pred_check_branch
          %252 = sbr.rel (%p250) target = $region40
        $region39: #{tpu_custom_call.1} parent=35 // pred_region
          %s253 = sand.u32 %s51, 1
          %s254 = scalar_lea.sflag [#allocation6], %s253
          %s255 = sand.u32 %s51, 1
          %s256 = smul.addr %s255, 8
          %s257 = scalar_lea.vmem [#allocation7], %s256
          %258 = dma.done %s254, 128
        $region40: #{tpu_custom_call.1} parent=35 // pred_fallthru
          _
      $region36: #{tpu_custom_call.1} parent=5 // pred_fallthru
        _
    $region6: #{tpu_custom_call.1} parent=1 // loop_footer
      %s20 = sadd.s32 1, %s16
    $region7: #{tpu_custom_call.1} parent=1 // loop_footer_branch
      %15 = sbr.rel target = $region3
    $region8: #{tpu_custom_call.1} parent=1 // loop_exit
      _
    %259 = vsyncpa [#allocation5], 1
    %s260 = scalar_lea.sflag [#allocation5], 1
    %261 = vsyncpa %s260, 1
    %262 = vsyncpa [#allocation6], 1
    %s263 = scalar_lea.sflag [#allocation6], 1
    %264 = vsyncpa %s263, 1

</llo_original>
